<compile_context>
chip_gen: v7x
topology: tpu7x:2x2x1
jax: 0.10.0
libtpu: 0.0.40
codegen_flags: <defaults>
</compile_context>

<pallas_src>
import functools

import jax
import jax.numpy as jnp
from jax.experimental import pallas as pl
from jax.experimental.pallas import tpu as pltpu

LANE = 128
SUBLANE = 8


def _round_up(x, m):
    return ((x + m - 1) // m) * m


def _choose_batch_tile(batch, batch_block):
    """Pick the batch tile: large (default 512), >=2 grid blocks when possible."""
    half = _round_up((batch + 1) // 2, SUBLANE)   # ensures n_blocks >= 2 for batch > 8
    full = _round_up(batch, SUBLANE)
    return max(SUBLANE, min(batch_block, half, full))


def pack_qnetwork_params(weights, biases, *, param_dtype=jnp.bfloat16):
    """Pack all layer weights into one lane-dense slab (param_dtype) and all
    biases into a small separate f32 slab (so bf16 never quantizes biases).

    Weight slab layout per layer i (all offsets static, 8-row aligned):
        rows [w_row, w_row + k_dim) : weight, zero-padded to (k_dim, out_pad)
      where k_dim = input_dim for layer 0 (activations arrive unpadded) and
      k_dim = previous layer's padded width (128) for later layers.

    Returns (w_slab, b_slab, meta, input_dim, output_dim) with
        meta[i] = (w_row, k_dim, out_pad).
    """
    num_layers = len(weights)
    in_dims = [w.shape[0] for w in weights]
    out_dims = [w.shape[1] for w in weights]
    out_pads = [_round_up(d, LANE) for d in out_dims]
    lane_pad = max(out_pads)

    meta = []
    row = 0
    for i in range(num_layers):
        k_dim = in_dims[0] if i == 0 else out_pads[i - 1]
        meta.append((row, k_dim, out_pads[i]))
        row += _round_up(k_dim, SUBLANE)
    total_rows = _round_up(row, SUBLANE)

    w_slab = jnp.zeros((total_rows, lane_pad), jnp.float32)
    b_slab = jnp.zeros((_round_up(num_layers, SUBLANE), lane_pad), jnp.float32)
    for i, (w, b) in enumerate(zip(weights, biases)):
        w_row, _, _ = meta[i]
        in_dim, out_dim = w.shape
        w_slab = w_slab.at[w_row:w_row + in_dim, :out_dim].set(w.astype(jnp.float32))
        b_slab = b_slab.at[i, :out_dim].set(jnp.reshape(b, (-1,)).astype(jnp.float32))
    w_slab = w_slab.astype(param_dtype)
    return w_slab, b_slab, tuple(meta), in_dims[0], out_dims[-1]


def make_qnetwork_kernel(meta, output_dim, compute_dtype):
    """Fused MLP kernel: every Linear (+ReLU) of the QNetwork in one body."""
    num_layers = len(meta)

    def kernel(x_ref, w_ref, b_ref, o_ref):
        # Activations cast to the MXU operand dtype in VMEM (no HBM cost).
        h = x_ref[...].astype(compute_dtype)
        for i, (w_row, k_dim, out_pad) in enumerate(meta):
            # Static slices of the resident parameter slabs (8-row aligned).
            w = w_ref[pl.ds(w_row, k_dim), pl.ds(0, out_pad)]
            b = b_ref[pl.ds(i, 1), pl.ds(0, out_pad)]            # f32 (1, out_pad)
            acc = jnp.dot(h, w, preferred_element_type=jnp.float32) + b
            if i < num_layers - 1:
                h = jnp.maximum(acc, 0.0).astype(compute_dtype)  # ReLU on hidden layers
            else:
                h = acc                                          # final layer stays f32
        o_ref[...] = h[:, :output_dim].astype(o_ref.dtype)

    return kernel


def qnetwork_forward(x, w_slab, b_slab, *, meta, input_dim, output_dim,
                     batch_block=512):
    """
    x:      (batch, input_dim) float32 (or bf16) activations
    w_slab: packed weight slab (see pack_qnetwork_params), bf16 or f32
    b_slab: packed f32 bias slab
    returns (batch, output_dim) float32
    """
    batch = x.shape[0]
    assert x.shape[1] == input_dim

    tb = _choose_batch_tile(batch, batch_block)
    batch_pad = _round_up(batch, tb)
    n_blocks = batch_pad // tb

    # Row-only padding, and only when the batch is ragged (no lane padding).
    x_in = x if batch_pad == batch else jnp.pad(x, ((0, batch_pad - batch), (0, 0)))

    kernel = make_qnetwork_kernel(meta, output_dim, w_slab.dtype)

    out = pl.pallas_call(
        kernel,
        out_shape=jax.ShapeDtypeStruct((batch_pad, output_dim), jnp.float32),
        grid_spec=pltpu.PrefetchScalarGridSpec(
            num_scalar_prefetch=0,
            grid=(n_blocks,),
            in_specs=[
                # Activations: (tb, input_dim) blocks; lane extent == full array
                # dim, so only real bytes move HBM->VMEM.
                pl.BlockSpec((tb, input_dim), lambda i: (i, 0)),
                # Packed weight slab, resident in VMEM across all grid steps.
                pl.BlockSpec(w_slab.shape, lambda i: (0, 0)),
                # Small f32 bias slab, also resident.
                pl.BlockSpec(b_slab.shape, lambda i: (0, 0)),
            ],
            # Output: (tb, output_dim) — last dim equals the full array dim, so
            # the writeback carries only the useful bytes (no 128-lane slab).
            out_specs=pl.BlockSpec((tb, output_dim), lambda i: (i, 0)),
        ),
        compiler_params=pltpu.CompilerParams(
            dimension_semantics=("parallel",),
        ),
    )(x_in, w_slab, b_slab)

    return out if batch_pad == batch else out[:batch]


def init_qnetwork_params(key, input_dim, output_dim, hidden_sizes):
    """Deterministic init mimicking nn.Linear's U(-1/sqrt(fan_in), 1/sqrt(fan_in))."""
    dims = [input_dim] + list(hidden_sizes) + [output_dim]
    weights, biases = [], []
    for i in range(len(dims) - 1):
        fan_in, fan_out = dims[i], dims[i + 1]
        key, kw, kb = jax.random.split(key, 3)
        bound = 1.0 / jnp.sqrt(jnp.float32(fan_in))
        # Stored in (in, out) layout == PyTorch weight.T
        w = jax.random.uniform(kw, (fan_in, fan_out), jnp.float32, -bound, bound)
        b = jax.random.uniform(kb, (fan_out,), jnp.float32, -bound, bound)
        weights.append(w)
        biases.append(b)
    return weights, biases


def qnetwork_reference(x, weights, biases):
    """Pure-JAX reference matching the PyTorch nn.Sequential semantics."""
    h = x
    n = len(weights)
    for i, (w, b) in enumerate(zip(weights, biases)):
        h = h @ w + b
        if i < n - 1:
            h = jnp.maximum(h, 0.0)
    return h


if __name__ == "__main__":
    # Shapes consistent with QNetwork(input_dim, output_dim, hidden_sizes)
    input_dim = 16
    hidden_sizes = [32, 32]
    output_dim = 8

    key = jax.random.PRNGKey(0)
    key, kx = jax.random.split(key)
    weights, biases = init_qnetwork_params(key, input_dim, output_dim, hidden_sizes)

    # Pack parameters ONCE (hoisted out of the per-step forward path).
    wslab_f32, bslab_f32, meta_f32, _, _ = pack_qnetwork_params(
        weights, biases, param_dtype=jnp.float32)
    wslab_bf16, bslab_bf16, meta_bf16, _, _ = pack_qnetwork_params(
        weights, biases, param_dtype=jnp.bfloat16)

    fwd_f32 = jax.jit(functools.partial(
        qnetwork_forward, meta=meta_f32, input_dim=input_dim, output_dim=output_dim))
    fwd_bf16 = jax.jit(functools.partial(
        qnetwork_forward, meta=meta_bf16, input_dim=input_dim, output_dim=output_dim))

    # --- Case 1: tiny batch (single grid block), f32 weights, exact check ---
    batch = 8
    x = jax.random.normal(kx, (batch, input_dim), dtype=jnp.float32)
    out = jax.block_until_ready(fwd_f32(x, wslab_f32, bslab_f32))
    ref = qnetwork_reference(x, weights, biases)
    assert out.shape == (batch, output_dim)
    assert jnp.allclose(out, ref, atol=1e-5, rtol=1e-5), "f32 mismatch (batch=8)"

    # --- Case 2: larger, non-multiple batch (2-block grid + row padding path) ---
    key, kx2 = jax.random.split(key)
    batch2 = 300
    x2 = jax.random.normal(kx2, (batch2, input_dim), dtype=jnp.float32)
    out2 = jax.block_until_ready(fwd_f32(x2, wslab_f32, bslab_f32))
    ref2 = qnetwork_reference(x2, weights, biases)
    assert out2.shape == (batch2, output_dim)
    assert jnp.allclose(out2, ref2, atol=1e-5, rtol=1e-5), "f32 mismatch (batch=300)"

    # --- Case 3: default bf16 weight slab (MXU-native), f32 biases + f32 accum ---
    out3 = jax.block_until_ready(fwd_bf16(x2, wslab_bf16, bslab_bf16))
    assert out3.shape == (batch2, output_dim)
    assert bool(jnp.all(jnp.isfinite(out3)))
    assert jnp.allclose(out3, ref2, atol=5e-2, rtol=5e-2), "bf16 path diverged"

    print("KERNEL_OK")
</pallas_src>

<mosaic_0001>
module attributes {stable_mosaic.version = 11 : i64} {
  func.func @kernel(%arg0: i32, %arg1: memref<8x16xf32, #tpu.memory_space<vmem>>, %arg2: memref<272x128xf32, #tpu.memory_space<vmem>>, %arg3: memref<8x128xf32, #tpu.memory_space<vmem>>, %arg4: memref<8x8xf32, #tpu.memory_space<vmem>>) attributes {dimension_semantics = [#tpu.dimension_semantics<parallel>], iteration_bounds = array<i64: 1>, scalar_prefetch = 0 : i64, scratch_operands = 0 : i64, tpu.core_type = #tpu.core_type<tc>, window_params = [{transform_indices = @transform_0, window_bounds = array<i64: 8, 16>}, {pipeline_mode = #tpu.pipeline_mode<synchronous>, transform_indices = @transform_1, window_bounds = array<i64: 272, 128>}, {pipeline_mode = #tpu.pipeline_mode<synchronous>, transform_indices = @transform_2, window_bounds = array<i64: 8, 128>}, {transform_indices = @transform_3, window_bounds = array<i64: 8, 8>}]} {
    %c0 = arith.constant 0 : index
    %c0_0 = arith.constant 0 : index
    %0 = vector.load %arg1[%c0, %c0_0] : memref<8x16xf32, #tpu.memory_space<vmem>>, vector<8x16xf32>
    %c0_1 = arith.constant 0 : index
    %c0_2 = arith.constant 0 : index
    %1 = vector.load %arg2[%c0_1, %c0_2] : memref<272x128xf32, #tpu.memory_space<vmem>>, vector<16x128xf32>
    %c0_3 = arith.constant 0 : index
    %c0_4 = arith.constant 0 : index
    %2 = vector.load %arg3[%c0_3, %c0_4] : memref<8x128xf32, #tpu.memory_space<vmem>>, vector<1x128xf32>
    %cst = arith.constant dense<0.000000e+00> : vector<8x128xf32>
    %3 = tpu.matmul %0, %1, %cst {dimension_numbers = #tpu.dot_dimension_numbers<[1], [0], [0], [1], [0, 0, 1, 1], [], []>} : vector<8x16xf32>, vector<16x128xf32>, vector<8x128xf32> -> vector<8x128xf32>
    %4 = vector.broadcast %2 : vector<1x128xf32> to vector<8x128xf32>
    %5 = arith.addf %3, %4 : vector<8x128xf32>
    %cst_5 = arith.constant 0.000000e+00 : f32
    %6 = vector.broadcast %cst_5 : f32 to vector<8x128xf32>
    %7 = arith.maximumf %5, %6 : vector<8x128xf32>
    %c16 = arith.constant 16 : index
    %c0_6 = arith.constant 0 : index
    %8 = vector.load %arg2[%c16, %c0_6] : memref<272x128xf32, #tpu.memory_space<vmem>>, vector<128x128xf32>
    %c1 = arith.constant 1 : index
    %c0_7 = arith.constant 0 : index
    %9 = vector.load %arg3[%c1, %c0_7] : memref<8x128xf32, #tpu.memory_space<vmem>>, vector<1x128xf32>
    %cst_8 = arith.constant dense<0.000000e+00> : vector<8x128xf32>
    %10 = tpu.matmul %7, %8, %cst_8 {dimension_numbers = #tpu.dot_dimension_numbers<[1], [0], [0], [1], [0, 0, 1, 1], [], []>} : vector<8x128xf32>, vector<128x128xf32>, vector<8x128xf32> -> vector<8x128xf32>
    %11 = vector.broadcast %9 : vector<1x128xf32> to vector<8x128xf32>
    %12 = arith.addf %10, %11 : vector<8x128xf32>
    %cst_9 = arith.constant 0.000000e+00 : f32
    %13 = vector.broadcast %cst_9 : f32 to vector<8x128xf32>
    %14 = arith.maximumf %12, %13 : vector<8x128xf32>
    %c144 = arith.constant 144 : index
    %c0_10 = arith.constant 0 : index
    %15 = vector.load %arg2[%c144, %c0_10] : memref<272x128xf32, #tpu.memory_space<vmem>>, vector<128x128xf32>
    %c2 = arith.constant 2 : index
    %c0_11 = arith.constant 0 : index
    %16 = vector.load %arg3[%c2, %c0_11] : memref<8x128xf32, #tpu.memory_space<vmem>>, vector<1x128xf32>
    %cst_12 = arith.constant dense<0.000000e+00> : vector<8x128xf32>
    %17 = tpu.matmul %14, %15, %cst_12 {dimension_numbers = #tpu.dot_dimension_numbers<[1], [0], [0], [1], [0, 0, 1, 1], [], []>} : vector<8x128xf32>, vector<128x128xf32>, vector<8x128xf32> -> vector<8x128xf32>
    %18 = vector.broadcast %16 : vector<1x128xf32> to vector<8x128xf32>
    %19 = arith.addf %17, %18 : vector<8x128xf32>
    %20 = vector.extract_strided_slice %19 {offsets = [0, 0], sizes = [8, 8], strides = [1, 1]} : vector<8x128xf32> to vector<8x8xf32>
    %c0_13 = arith.constant 0 : index
    %c0_14 = arith.constant 0 : index
    %21 = vector.load %arg4[%c0_13, %c0_14] : memref<8x8xf32, #tpu.memory_space<vmem>>, vector<8x8xf32>
    tpu.vector_store %arg4[%c0_13, %c0_14], %20 {strides = array<i32>} : memref<8x8xf32, #tpu.memory_space<vmem>>, vector<8x8xf32>,
    return
  }
  func.func @transform_0(%arg0: i32) -> (i32, i32) {
    %c0_i32 = arith.constant 0 : i32
    %c0_i32_0 = arith.constant 0 : i32
    return %arg0, %c0_i32 : i32, i32
  }
  func.func @transform_1(%arg0: i32) -> (i32, i32) {
    %c0_i32 = arith.constant 0 : i32
    %c0_i32_0 = arith.constant 0 : i32
    %c0_i32_1 = arith.constant 0 : i32
    return %c0_i32, %c0_i32_0 : i32, i32
  }
  func.func @transform_2(%arg0: i32) -> (i32, i32) {
    %c0_i32 = arith.constant 0 : i32
    %c0_i32_0 = arith.constant 0 : i32
    %c0_i32_1 = arith.constant 0 : i32
    return %c0_i32, %c0_i32_0 : i32, i32
  }
  func.func @transform_3(%arg0: i32) -> (i32, i32) {
    %c0_i32 = arith.constant 0 : i32
    %c0_i32_0 = arith.constant 0 : i32
    return %arg0, %c0_i32 : i32, i32
  }
}

</mosaic_0001>

<llo_original>
// kernel: qnetwork_forward.1
$region0: #{qnetwork_forward.1}
  #allocation0 [shape = 'u32[]', space=smem, size = 0x4, offset = 0x4, fixed_abs, tag = 'smem constant byte address 0x4 - core index']
  #allocation1 [shape = 'u32[144,128]{1,0:T(1,128)}', space=vmem, size = 0x12000, scoped, tag = 'internal scratch']
  %s0 = inlined_call_operand.hbm [shape: f32[8,16], index: 0, kind: input, shape index: {}]
  %s1 = inlined_call_operand.hbm [shape: f32[272,128], index: 1, kind: input, shape index: {}]
  %s2 = inlined_call_operand.hbm [shape: f32[8,128], index: 2, kind: input, shape index: {}]
  %s3 = inlined_call_operand.hbm [shape: f32[8,8], index: 3, kind: output, shape index: {}]
  %s4 = sld [smem:[#allocation0]]
  $region34: #{qnetwork_forward.1} parent=0
    _
  %s6 = ssub.s32 1, %s4
  %s7 = scalar_select 0, %s6, %s4
  $region1: #{qnetwork_forward.1} parent=0
    #allocation2 [shape = 'u8[4096]{0}', space=vmem, size = 0x1000, scoped, tag = 'input window, operand 0, single buffered']
    #allocation3 [shape = 's32[1]{0}', space=sflag, size = 0x4, scoped, tag = 'scoped memory for qnetwork_forward.1']
    #allocation4 [shape = 's32[1]{0}', space=sflag, size = 0x4, scoped, tag = 'scoped memory for qnetwork_forward.1']
    #allocation5 [shape = 'u8[139264]{0}', space=vmem, size = 0x22000, scoped, tag = 'input window, operand 1, single buffered']
    #allocation6 [shape = 's32[1]{0}', space=sflag, size = 0x4, scoped, tag = 'scoped memory for qnetwork_forward.1']
    #allocation7 [shape = 'u8[4096]{0}', space=vmem, size = 0x1000, scoped, tag = 'input window, operand 2, single buffered']
    #allocation8 [shape = 'u8[4096]{0}', space=vmem, size = 0x1000, scoped, tag = 'output window, operand 0, single buffered']
    %8 = vsyncpa [#allocation3], 0
    %9 = vsyncpa [#allocation6], 0
    %10 = vsyncpa [#allocation4], 0
    // Predicated region
    $region2: #{qnetwork_forward.1} parent=1 // pred_check
      _
    $region3: #{qnetwork_forward.1} parent=1 // pred_check_branch
      %12 = sbr.rel (0) target = $region5
    $region4: #{qnetwork_forward.1} parent=1 // pred_region
      %s14 = ssub.s32 128, 128
      %15 = vsyncadd [#allocation3], %s14
      %s17 = sshll.u32 [#allocation2], 4
      %s18 = int_to_ptr.vmem [resolvable:$true] %s17
      %20 = dma.hbm_to_vmem [thread:$0]  %s0, 128, %s18, [#allocation3]
    $region5: #{qnetwork_forward.1} parent=1 // pred_fallthru
      _
    // Predicated region
    $region6: #{qnetwork_forward.1} parent=1 // pred_check
      _
    $region7: #{qnetwork_forward.1} parent=1 // pred_check_branch
      %22 = sbr.rel (0) target = $region9
    $region8: #{qnetwork_forward.1} parent=1 // pred_region
      %s24 = ssub.s32 4352, 4352
      %25 = vsyncadd [#allocation6], %s24
      %s26 = sshll.u32 [#allocation5], 4
      %s27 = int_to_ptr.vmem [resolvable:$true] %s26
      %32 = dma.hbm_to_vmem [thread:$0]  %s1, 4352, %s27, [#allocation6], 128, 128, 8
    $region9: #{qnetwork_forward.1} parent=1 // pred_fallthru
      _
    // Predicated region
    $region10: #{qnetwork_forward.1} parent=1 // pred_check
      _
    $region11: #{qnetwork_forward.1} parent=1 // pred_check_branch
      %34 = sbr.rel (0) target = $region13
    $region12: #{qnetwork_forward.1} parent=1 // pred_region
      %s36 = ssub.s32 128, 128
      %37 = vsyncadd [#allocation6], %s36
      %s39 = sshll.u32 [#allocation7], 4
      %s40 = int_to_ptr.vmem [resolvable:$true] %s39
      %42 = dma.hbm_to_vmem [thread:$0]  %s2, 128, %s40, [#allocation6]
    $region13: #{qnetwork_forward.1} parent=1 // pred_fallthru
      _
    // Predicated region
    $region14: #{qnetwork_forward.1} parent=1 // pred_check
      _
    $region15: #{qnetwork_forward.1} parent=1 // pred_check_branch
      %44 = sbr.rel (0) target = $region17
    $region16: #{qnetwork_forward.1} parent=1 // pred_region
      %45 = dma.done [#allocation3], 128
    $region17: #{qnetwork_forward.1} parent=1 // pred_fallthru
      _
    // Predicated region
    $region18: #{qnetwork_forward.1} parent=1 // pred_check
      _
    $region19: #{qnetwork_forward.1} parent=1 // pred_check_branch
      %47 = sbr.rel (0) target = $region21
    $region20: #{qnetwork_forward.1} parent=1 // pred_region
      %48 = dma.done [#allocation6], 4352
    $region21: #{qnetwork_forward.1} parent=1 // pred_fallthru
      _
    // Predicated region
    $region22: #{qnetwork_forward.1} parent=1 // pred_check
      _
    $region23: #{qnetwork_forward.1} parent=1 // pred_check_branch
      %50 = sbr.rel (0) target = $region25
    $region24: #{qnetwork_forward.1} parent=1 // pred_region
      %51 = dma.done [#allocation6], 128
    $region25: #{qnetwork_forward.1} parent=1 // pred_fallthru
      _
    %v52 = vld [vmem:[#allocation2] sm:$0xff]
    %v53 = vld [vmem:[#allocation5] sm:$0xff]
    %v54 = vld [vmem:[#allocation5 + $0x8] sm:$0xff]
    %v55 = vld [vmem:[#allocation7] sm:$0x1]
    %v56 = vlaneseq
    %v57 = vshrl.u32 %v56, 7
    %v58 = vsub.s32 0, %v57
    %v59 = vrot.slane %v55, %v58
    %vm60 = vcmask 130048
    %v62 = vsel %vm60, %v52, 0
    %64 = vmatprep.subr.mxu0 0.0
    %65 = vmatpush1.msra.mxu0 %v53
    %66 = vmatprep.subr.mxu0 0.0
    %67 = vmatpush1.msra.mxu0 %v54
    %68 = vmatprep.subr.mxu0 0.0
    %69 = vmatpush1.msra.mxu0 0.0
    %70 = vmatprep.subr.mxu0 0.0
    %71 = vmatpush1.msra.mxu0 0.0
    %72 = vmatprep.subr.mxu0 0.0
    %73 = vmatpush1.msra.mxu0 0.0
    %74 = vmatprep.subr.mxu0 0.0
    %75 = vmatpush1.msra.mxu0 0.0
    %76 = vmatprep.subr.mxu0 0.0
    %77 = vmatpush1.msra.mxu0 0.0
    %78 = vmatprep.subr.mxu0 0.0
    %79 = vmatpush1.msra.mxu0 0.0
    %80 = vmatprep.subr.mxu0 0.0
    %81 = vmatpush1.msra.mxu0 0.0
    %82 = vmatprep.subr.mxu0 0.0
    %83 = vmatpush1.msra.mxu0 0.0
    %84 = vmatprep.subr.mxu0 0.0
    %85 = vmatpush1.msra.mxu0 0.0
    %86 = vmatprep.subr.mxu0 0.0
    %87 = vmatpush1.msra.mxu0 0.0
    %88 = vmatprep.subr.mxu0 0.0
    %89 = vmatpush1.msra.mxu0 0.0
    %90 = vmatprep.subr.mxu0 0.0
    %91 = vmatpush1.msra.mxu0 0.0
    %92 = vmatprep.subr.mxu0 0.0
    %93 = vmatpush1.msra.mxu0 0.0
    %94 = vmatprep.subr.mxu0 0.0
    %95 = vmatpush1.msra.mxu0 0.0
    %96 = vmatprep.subr.mxu0 0.0
    %97 = vmatpush1.msra.mxu0 0.0
    %98 = vmatprep.subr.mxu0 0.0
    %99 = vmatpush1.msra.mxu0 0.0
    %100 = vmatprep.subr.mxu0 0.0
    %101 = vmatpush1.msra.mxu0 0.0
    %102 = vmatprep.subr.mxu0 0.0
    %103 = vmatpush1.msra.mxu0 0.0
    %104 = vmatprep.subr.mxu0 0.0
    %105 = vmatpush1.msra.mxu0 0.0
    %106 = vmatprep.subr.mxu0 0.0
    %107 = vmatpush1.msra.mxu0 0.0
    %108 = vmatprep.subr.mxu0 0.0
    %109 = vmatpush1.msra.mxu0 0.0
    %110 = vmatprep.subr.mxu0 0.0
    %111 = vmatpush1.msra.mxu0 0.0
    %112 = vmatprep.subr.mxu0 0.0
    %113 = vmatpush1.msra.mxu0 0.0
    %114 = vmatprep.subr.mxu0 0.0
    %115 = vmatpush1.msra.mxu0 0.0
    %116 = vmatprep.subr.mxu0 0.0
    %117 = vmatpush1.msra.mxu0 0.0
    %118 = vmatprep.subr.mxu0 0.0
    %119 = vmatpush1.msra.mxu0 0.0
    %120 = vmatprep.subr.mxu0 0.0
    %121 = vmatpush1.msra.mxu0 0.0
    %122 = vmatprep.subr.mxu0 0.0
    %123 = vmatpush1.msra.mxu0 0.0
    %124 = vmatprep.subr.mxu0 0.0
    %125 = vmatpush1.msra.mxu0 0.0
    %126 = vmatprep.subr.mxu0 0.0
    %127 = vmatpush1.msra.mxu0 0.0
    %128 = vmatprep.mubr.f32.mxu0 0.0
    %129 = vmatmul.mubr.f32.gmra.mrb[0].mxu0 %v62
    %v130 = vpop.f32.mrb[0].mxu0
    %v131 = vadd.f32 %v59, %v130
    %v132 = vpop.f32.mrb[0].mxu0
    %133 = vdwg.mxu0
    %v134 = vmax.f32 %v131, 0.0
    %v135 = vld [vmem:[#allocation5 + $0x10] sm:$0xff]
    %v136 = vld [vmem:[#allocation5 + $0x18] sm:$0xff]
    %v137 = vld [vmem:[#allocation5 + $0x20] sm:$0xff]
    %v138 = vld [vmem:[#allocation5 + $0x28] sm:$0xff]
    %v139 = vld [vmem:[#allocation5 + $0x30] sm:$0xff]
    %v140 = vld [vmem:[#allocation5 + $0x38] sm:$0xff]
    %v141 = vld [vmem:[#allocation5 + $0x40] sm:$0xff]
    %v142 = vld [vmem:[#allocation5 + $0x48] sm:$0xff]
    %v143 = vld [vmem:[#allocation5 + $0x50] sm:$0xff]
    %v144 = vld [vmem:[#allocation5 + $0x58] sm:$0xff]
    %v145 = vld [vmem:[#allocation5 + $0x60] sm:$0xff]
    %v146 = vld [vmem:[#allocation5 + $0x68] sm:$0xff]
    %v147 = vld [vmem:[#allocation5 + $0x70] sm:$0xff]
    %v148 = vld [vmem:[#allocation5 + $0x78] sm:$0xff]
    %v149 = vld [vmem:[#allocation5 + $0x80] sm:$0xff]
    %v150 = vld [vmem:[#allocation5 + $0x88] sm:$0xff]
    %v151 = vld [vmem:[#allocation7 + $0x1] sm:$0x1]
    %v152 = vlaneseq
    %v153 = vshrl.u32 %v152, 7
    %v154 = vsub.s32 0, %v153
    %v155 = vrot.slane %v151, %v154
    %156 = vmatprep.subr.mxu0 0.0
    %157 = vmatpush1.msra.mxu0 %v135
    %158 = vmatprep.subr.mxu0 0.0
    %159 = vmatpush1.msra.mxu0 %v136
    %160 = vmatprep.subr.mxu0 0.0
    %161 = vmatpush1.msra.mxu0 %v137
    %162 = vmatprep.subr.mxu0 0.0
    %163 = vmatpush1.msra.mxu0 %v138
    %164 = vmatprep.subr.mxu0 0.0
    %165 = vmatpush1.msra.mxu0 %v139
    %166 = vmatprep.subr.mxu0 0.0
    %167 = vmatpush1.msra.mxu0 %v140
    %168 = vmatprep.subr.mxu0 0.0
    %169 = vmatpush1.msra.mxu0 %v141
    %170 = vmatprep.subr.mxu0 0.0
    %171 = vmatpush1.msra.mxu0 %v142
    %172 = vmatprep.subr.mxu0 0.0
    %173 = vmatpush1.msra.mxu0 %v143
    %174 = vmatprep.subr.mxu0 0.0
    %175 = vmatpush1.msra.mxu0 %v144
    %176 = vmatprep.subr.mxu0 0.0
    %177 = vmatpush1.msra.mxu0 %v145
    %178 = vmatprep.subr.mxu0 0.0
    %179 = vmatpush1.msra.mxu0 %v146
    %180 = vmatprep.subr.mxu0 0.0
    %181 = vmatpush1.msra.mxu0 %v147
    %182 = vmatprep.subr.mxu0 0.0
    %183 = vmatpush1.msra.mxu0 %v148
    %184 = vmatprep.subr.mxu0 0.0
    %185 = vmatpush1.msra.mxu0 %v149
    %186 = vmatprep.subr.mxu0 0.0
    %187 = vmatpush1.msra.mxu0 %v150
    %188 = vmatprep.subr.mxu0 0.0
    %189 = vmatpush1.msra.mxu0 0.0
    %190 = vmatprep.subr.mxu0 0.0
    %191 = vmatpush1.msra.mxu0 0.0
    %192 = vmatprep.subr.mxu0 0.0
    %193 = vmatpush1.msra.mxu0 0.0
    %194 = vmatprep.subr.mxu0 0.0
    %195 = vmatpush1.msra.mxu0 0.0
    %196 = vmatprep.subr.mxu0 0.0
    %197 = vmatpush1.msra.mxu0 0.0
    %198 = vmatprep.subr.mxu0 0.0
    %199 = vmatpush1.msra.mxu0 0.0
    %200 = vmatprep.subr.mxu0 0.0
    %201 = vmatpush1.msra.mxu0 0.0
    %202 = vmatprep.subr.mxu0 0.0
    %203 = vmatpush1.msra.mxu0 0.0
    %204 = vmatprep.subr.mxu0 0.0
    %205 = vmatpush1.msra.mxu0 0.0
    %206 = vmatprep.subr.mxu0 0.0
    %207 = vmatpush1.msra.mxu0 0.0
    %208 = vmatprep.subr.mxu0 0.0
    %209 = vmatpush1.msra.mxu0 0.0
    %210 = vmatprep.subr.mxu0 0.0
    %211 = vmatpush1.msra.mxu0 0.0
    %212 = vmatprep.subr.mxu0 0.0
    %213 = vmatpush1.msra.mxu0 0.0
    %214 = vmatprep.subr.mxu0 0.0
    %215 = vmatpush1.msra.mxu0 0.0
    %216 = vmatprep.subr.mxu0 0.0
    %217 = vmatpush1.msra.mxu0 0.0
    %218 = vmatprep.subr.mxu0 0.0
    %219 = vmatpush1.msra.mxu0 0.0
    %220 = vmatprep.mubr.f32.mxu0 0.0
    %221 = vmatmul.mubr.f32.gmra.mrb[0].mxu0 %v134
    %v222 = vpop.f32.mrb[0].mxu0
    %v223 = vadd.f32 %v155, %v222
    %v224 = vpop.f32.mrb[0].mxu0
    %225 = vdwg.mxu0
    %v226 = vmax.f32 %v223, 0.0
    %v227 = vld [vmem:[#allocation5 + $0x90] sm:$0xff]
    %v228 = vld [vmem:[#allocation5 + $0x98] sm:$0xff]
    %v229 = vld [vmem:[#allocation5 + $0xa0] sm:$0xff]
    %v230 = vld [vmem:[#allocation5 + $0xa8] sm:$0xff]
    %v231 = vld [vmem:[#allocation5 + $0xb0] sm:$0xff]
    %v232 = vld [vmem:[#allocation5 + $0xb8] sm:$0xff]
    %v233 = vld [vmem:[#allocation5 + $0xc0] sm:$0xff]
    %v234 = vld [vmem:[#allocation5 + $0xc8] sm:$0xff]
    %v235 = vld [vmem:[#allocation5 + $0xd0] sm:$0xff]
    %v236 = vld [vmem:[#allocation5 + $0xd8] sm:$0xff]
    %v237 = vld [vmem:[#allocation5 + $0xe0] sm:$0xff]
    %v238 = vld [vmem:[#allocation5 + $0xe8] sm:$0xff]
    %v239 = vld [vmem:[#allocation5 + $0xf0] sm:$0xff]
    %v240 = vld [vmem:[#allocation5 + $0xf8] sm:$0xff]
    %v241 = vld [vmem:[#allocation5 + $0x100] sm:$0xff]
    %v242 = vld [vmem:[#allocation5 + $0x108] sm:$0xff]
    %v243 = vld [vmem:[#allocation7 + $0x2] sm:$0x1]
    %v244 = vlaneseq
    %v245 = vshrl.u32 %v244, 7
    %v246 = vsub.s32 0, %v245
    %v247 = vrot.slane %v243, %v246
    %248 = vmatprep.subr.mxu0 0.0
    %249 = vmatpush1.msra.mxu0 %v227
    %250 = vmatprep.subr.mxu0 0.0
    %251 = vmatpush1.msra.mxu0 %v228
    %252 = vmatprep.subr.mxu0 0.0
    %253 = vmatpush1.msra.mxu0 %v229
    %254 = vmatprep.subr.mxu0 0.0
    %255 = vmatpush1.msra.mxu0 %v230
    %256 = vmatprep.subr.mxu0 0.0
    %257 = vmatpush1.msra.mxu0 %v231
    %258 = vmatprep.subr.mxu0 0.0
    %259 = vmatpush1.msra.mxu0 %v232
    %260 = vmatprep.subr.mxu0 0.0
    %261 = vmatpush1.msra.mxu0 %v233
    %262 = vmatprep.subr.mxu0 0.0
    %263 = vmatpush1.msra.mxu0 %v234
    %264 = vmatprep.subr.mxu0 0.0
    %265 = vmatpush1.msra.mxu0 %v235
    %266 = vmatprep.subr.mxu0 0.0
    %267 = vmatpush1.msra.mxu0 %v236
    %268 = vmatprep.subr.mxu0 0.0
    %269 = vmatpush1.msra.mxu0 %v237
    %270 = vmatprep.subr.mxu0 0.0
    %271 = vmatpush1.msra.mxu0 %v238
    %272 = vmatprep.subr.mxu0 0.0
    %273 = vmatpush1.msra.mxu0 %v239
    %274 = vmatprep.subr.mxu0 0.0
    %275 = vmatpush1.msra.mxu0 %v240
    %276 = vmatprep.subr.mxu0 0.0
    %277 = vmatpush1.msra.mxu0 %v241
    %278 = vmatprep.subr.mxu0 0.0
    %279 = vmatpush1.msra.mxu0 %v242
    %280 = vmatprep.subr.mxu0 0.0
    %281 = vmatpush1.msra.mxu0 0.0
    %282 = vmatprep.subr.mxu0 0.0
    %283 = vmatpush1.msra.mxu0 0.0
    %284 = vmatprep.subr.mxu0 0.0
    %285 = vmatpush1.msra.mxu0 0.0
    %286 = vmatprep.subr.mxu0 0.0
    %287 = vmatpush1.msra.mxu0 0.0
    %288 = vmatprep.subr.mxu0 0.0
    %289 = vmatpush1.msra.mxu0 0.0
    %290 = vmatprep.subr.mxu0 0.0
    %291 = vmatpush1.msra.mxu0 0.0
    %292 = vmatprep.subr.mxu0 0.0
    %293 = vmatpush1.msra.mxu0 0.0
    %294 = vmatprep.subr.mxu0 0.0
    %295 = vmatpush1.msra.mxu0 0.0
    %296 = vmatprep.subr.mxu0 0.0
    %297 = vmatpush1.msra.mxu0 0.0
    %298 = vmatprep.subr.mxu0 0.0
    %299 = vmatpush1.msra.mxu0 0.0
    %300 = vmatprep.subr.mxu0 0.0
    %301 = vmatpush1.msra.mxu0 0.0
    %302 = vmatprep.subr.mxu0 0.0
    %303 = vmatpush1.msra.mxu0 0.0
    %304 = vmatprep.subr.mxu0 0.0
    %305 = vmatpush1.msra.mxu0 0.0
    %306 = vmatprep.subr.mxu0 0.0
    %307 = vmatpush1.msra.mxu0 0.0
    %308 = vmatprep.subr.mxu0 0.0
    %309 = vmatpush1.msra.mxu0 0.0
    %310 = vmatprep.subr.mxu0 0.0
    %311 = vmatpush1.msra.mxu0 0.0
    %312 = vmatprep.mubr.f32.mxu0 0.0
    %313 = vmatmul.mubr.f32.gmra.mrb[0].mxu0 %v226
    %v314 = vpop.f32.mrb[0].mxu0
    %v315 = vadd.f32 %v247, %v314
    %v316 = vpop.f32.mrb[0].mxu0
    %317 = vdwg.mxu0
    %vm318 = vcmask 64512
    %319 = vst.msk [vmem:[#allocation8] sm:$0xff] %vm318, %v315
    // Predicated region
    $region26: #{qnetwork_forward.1} parent=1 // pred_check
      _
    $region27: #{qnetwork_forward.1} parent=1 // pred_check_branch
      %321 = sbr.rel (0) target = $region29
    $region28: #{qnetwork_forward.1} parent=1 // pred_region
      %s323 = ssub.s32 128, 128
      %324 = vsyncadd [#allocation4], %s323
      %s326 = sshll.u32 [#allocation8], 4
      %s327 = int_to_ptr.vmem [resolvable:$true] %s326
      %329 = dma.vmem_to_hbm [thread:$0]  %s327, 128, %s3, [#allocation4]
    $region29: #{qnetwork_forward.1} parent=1 // pred_fallthru
      _
    // Predicated region
    $region30: #{qnetwork_forward.1} parent=1 // pred_check
      _
    $region31: #{qnetwork_forward.1} parent=1 // pred_check_branch
      %331 = sbr.rel (0) target = $region33
    $region32: #{qnetwork_forward.1} parent=1 // pred_region
      %332 = dma.done [#allocation4], 128
    $region33: #{qnetwork_forward.1} parent=1 // pred_fallthru
      _
    %333 = vsyncpa [#allocation3], 1
    %334 = vsyncpa [#allocation6], 1
    %335 = vsyncpa [#allocation4], 1

</llo_original>
